<compile_context>
chip_gen: v7x
topology: tpu7x:2x2x1
jax: 0.10.0
libtpu: 0.0.40
codegen_flags: <defaults>
</compile_context>

<pallas_src>
import functools

import numpy as np
import jax
import jax.numpy as jnp
from jax.experimental import pallas as pl
from jax.experimental.pallas import tpu as pltpu


def _round_up(x, m):
    return (x + m - 1) // m * m


# -----------------------------------------------------------------------------
# Kernel: one batch tile, all articulators fused via block-diagonal weights.
# -----------------------------------------------------------------------------
def autoenc_kernel(x_ref, p_ref, o_ref, *, lane, in_width):
    """x_ref : (TB, in_width)        flattened (articulator-major) input tile.
    p_ref : (6*lane + 8, lane)       packed params: 6 (lane, lane) weight blocks
                                     followed by 8 bias rows (rows 0..5 used).
    o_ref : (TB, lane)               [recon (n_art*F) | latent (n_art*C) | 0].
    """
    bias_base = 6 * lane

    def layer(h, i, kdim):
        w = p_ref[i * lane: i * lane + kdim, :]           # (kdim, lane) static slice
        b = p_ref[bias_base + i: bias_base + i + 1, :]    # (1, lane)
        return jnp.dot(h, w, preferred_element_type=jnp.float32) + b

    x = x_ref[...]                                        # single full tile load
    h = jnp.maximum(layer(x, 0, in_width), 0.0)           # enc Linear(F->H)   + ReLU
    h = jnp.maximum(layer(h, 1, lane), 0.0)               # enc Linear(H->H/2) + ReLU
    lat = jnp.tanh(layer(h, 2, lane))                     # enc Linear(H/2->C), latent at lanes [n_art*F, ...)
    d = jnp.maximum(layer(lat, 3, lane), 0.0)             # dec Linear(C->H/2) + ReLU
    d = jnp.maximum(layer(d, 4, lane), 0.0)               # dec Linear(H/2->H) + ReLU
    y = layer(d, 5, lane)                                 # dec Linear(H->F), recon at lanes [0, n_art*F)
    # y and lat occupy disjoint lane ranges (exact zeros elsewhere by packing),
    # so a single add yields the packed slab -> one lane-dense store.
    o_ref[...] = y + lat


# -----------------------------------------------------------------------------
# One-time host-side parameter packing.
# -----------------------------------------------------------------------------
def pack_params_for_kernel(params, n_art, in_features, hidden, num_components):
    """PyTorch-layout stacked params -> single block-diagonal f32 slab."""
    F, H, C = in_features, hidden, num_components
    H2 = H // 2
    lat_off = n_art * F
    lane = _round_up(max(n_art * F, n_art * H, n_art * H2, lat_off + n_art * C), 128)

    # (weight name, bias name, in_dim, out_dim, row_offset, col_offset)
    layer_defs = [
        ("enc_w1", "enc_b1", F,  H,  0,       0),
        ("enc_w2", "enc_b2", H,  H2, 0,       0),
        ("enc_w3", "enc_b3", H2, C,  0,       lat_off),   # latent lanes start at n_art*F
        ("dec_w1", "dec_b1", C,  H2, lat_off, 0),
        ("dec_w2", "dec_b2", H2, H,  0,       0),
        ("dec_w3", "dec_b3", H,  F,  0,       0),
    ]
    slab = np.zeros((6 * lane + 8, lane), dtype=np.float32)
    for li, (wname, bname, din, dout, roff, coff) in enumerate(layer_defs):
        w = np.asarray(params[wname], dtype=np.float32)   # (n_art, out, in) PyTorch layout
        b = np.asarray(params[bname], dtype=np.float32)   # (n_art, out)
        for a in range(n_art):
            r0 = li * lane + roff + a * din
            c0 = coff + a * dout
            slab[r0:r0 + din, c0:c0 + dout] = w[a].T       # (in, out)
            slab[6 * lane + li, c0:c0 + dout] = b[a]
    return jnp.asarray(slab), lane


# -----------------------------------------------------------------------------
# Wrapper
# -----------------------------------------------------------------------------
@functools.partial(jax.jit, static_argnames=("num_components",))
def multi_articulator_autoencoder(x, pslab, *, num_components):
    """x: (bs, N_art, in_features) f32; pslab from pack_params_for_kernel.

    Returns (outputs (bs, N_art, in_features), latent_space (bs, N_art*C)).
    """
    bs, n_art, F = x.shape
    lane = pslab.shape[1]
    in_width = n_art * F
    lat_off = in_width
    lat_dim = n_art * num_components

    # Batch tile: >=512 rows for big batches (amortize ~0.35 us/step), padded to
    # a sublane multiple otherwise.  TB=512 keeps per-tile VMEM << 64 MiB (v7x).
    tb = 512 if bs >= 512 else _round_up(bs, 8)
    bs_pad = _round_up(bs, tb)

    x2d = x.reshape(bs, in_width)                      # contiguous reshape, no transpose
    if bs_pad != bs:
        x2d = jnp.pad(x2d, ((0, bs_pad - bs), (0, 0)))

    grid = (bs_pad // tb,)
    macs = bs_pad * (in_width * lane + 5 * lane * lane)
    cost = pl.CostEstimate(
        flops=2 * macs,
        transcendentals=bs_pad * lane,
        bytes_accessed=4 * (bs_pad * in_width + int(pslab.size) + bs_pad * lane),
    )

    out = pl.pallas_call(
        functools.partial(autoenc_kernel, lane=lane, in_width=in_width),
        grid=grid,
        in_specs=[
            pl.BlockSpec((tb, in_width), lambda i: (i, 0)),     # stream batch tiles
            pl.BlockSpec(pslab.shape, lambda i: (0, 0)),        # params VMEM-resident
        ],
        out_specs=pl.BlockSpec((tb, lane), lambda i: (i, 0)),   # lane-dense packed output
        out_shape=jax.ShapeDtypeStruct((bs_pad, lane), jnp.float32),
        compiler_params=pltpu.CompilerParams(dimension_semantics=("parallel",)),
        cost_estimate=cost,
    )(x2d, pslab)

    outputs = out[:bs, :in_width].reshape(bs, n_art, F)
    latent_space = out[:bs, lat_off:lat_off + lat_dim]
    return outputs, latent_space


# -----------------------------------------------------------------------------
# Deterministic init + pure-JAX reference (including the -inf scatter + max).
# -----------------------------------------------------------------------------
def init_params(key, n_art, in_features, hidden, n_comp):
    H, H2 = hidden, hidden // 2
    shapes = {
        "enc_w1": (n_art, H, in_features), "enc_b1": (n_art, H),
        "enc_w2": (n_art, H2, H),          "enc_b2": (n_art, H2),
        "enc_w3": (n_art, n_comp, H2),     "enc_b3": (n_art, n_comp),
        "dec_w1": (n_art, H2, n_comp),     "dec_b1": (n_art, H2),
        "dec_w2": (n_art, H, H2),          "dec_b2": (n_art, H),
        "dec_w3": (n_art, in_features, H), "dec_b3": (n_art, in_features),
    }
    params = {}
    for i, (name, shp) in enumerate(shapes.items()):
        k = jax.random.fold_in(key, i)
        fan_in = shapes[name.replace("_b", "_w")][-1]
        bound = 1.0 / np.sqrt(fan_in)
        params[name] = jax.random.uniform(k, shp, jnp.float32, -bound, bound)
    return params


def reference_forward(x, params):
    bs, n_art, F = x.shape
    C = params["enc_w3"].shape[1]
    latent_size = n_art * C
    stacks = []
    for a in range(n_art):
        xa = x[:, a, :]
        h = jax.nn.relu(xa @ params["enc_w1"][a].T + params["enc_b1"][a])
        h = jax.nn.relu(h @ params["enc_w2"][a].T + params["enc_b2"][a])
        z = h @ params["enc_w3"][a].T + params["enc_b3"][a]
        full = jnp.full((bs, latent_size), -jnp.inf, dtype=jnp.float32)
        full = full.at[:, a * C:(a + 1) * C].set(z)
        stacks.append(full)
    latent = jnp.tanh(jnp.max(jnp.stack(stacks, axis=1), axis=1))
    outs = []
    for a in range(n_art):
        za = latent[:, a * C:(a + 1) * C]
        d = jax.nn.relu(za @ params["dec_w1"][a].T + params["dec_b1"][a])
        d = jax.nn.relu(d @ params["dec_w2"][a].T + params["dec_b2"][a])
        outs.append((d @ params["dec_w3"][a].T + params["dec_b3"][a])[:, None, :])
    return jnp.concatenate(outs, axis=1), latent


if __name__ == "__main__":
    bs = 2
    n_art = 3            # number of articulators
    in_features = 16     # points per articulator contour
    hidden = 32          # hidden_features
    n_comp = 4           # num_components per articulator -> latent_size = 12

    # indices_dict (documents the latent layout): each articulator owns a disjoint
    # contiguous block of the latent space, as produced by make_indices_dict.
    indices_dict = {f"art{a}": list(range(a * n_comp, (a + 1) * n_comp)) for a in range(n_art)}
    _ = indices_dict

    key = jax.random.PRNGKey(0)
    kx, kp = jax.random.split(key)
    x = jax.random.normal(kx, (bs, n_art, in_features), dtype=jnp.float32)
    params = init_params(kp, n_art, in_features, hidden, n_comp)
    pslab, _lane = pack_params_for_kernel(params, n_art, in_features, hidden, n_comp)

    outputs, latent_space = multi_articulator_autoencoder(x, pslab, num_components=n_comp)
    outputs, latent_space = jax.block_until_ready((outputs, latent_space))

    ref_out, ref_lat = reference_forward(x, params)
    assert outputs.shape == (bs, n_art, in_features)
    assert latent_space.shape == (bs, n_art * n_comp)
    np.testing.assert_allclose(np.asarray(outputs), np.asarray(ref_out), rtol=1e-5, atol=1e-5)
    np.testing.assert_allclose(np.asarray(latent_space), np.asarray(ref_lat), rtol=1e-5, atol=1e-5)

    print("KERNEL_OK")
</pallas_src>

<mosaic_0001>
module attributes {stable_mosaic.version = 11 : i64} {
  func.func @autoenc_kernel(%arg0: i32, %arg1: memref<8x48xf32, #tpu.memory_space<vmem>>, %arg2: memref<776x128xf32, #tpu.memory_space<vmem>>, %arg3: memref<8x128xf32, #tpu.memory_space<vmem>>) attributes {dimension_semantics = [#tpu.dimension_semantics<parallel>], iteration_bounds = array<i64: 1>, scalar_prefetch = 0 : i64, scratch_operands = 0 : i64, tpu.core_type = #tpu.core_type<tc>, window_params = [{transform_indices = @transform_0, window_bounds = array<i64: 8, 48>}, {pipeline_mode = #tpu.pipeline_mode<synchronous>, transform_indices = @transform_1, window_bounds = array<i64: 776, 128>}, {transform_indices = @transform_2, window_bounds = array<i64: 8, 128>}]} {
    %c0 = arith.constant 0 : index
    %c0_0 = arith.constant 0 : index
    %0 = vector.load %arg1[%c0, %c0_0] : memref<8x48xf32, #tpu.memory_space<vmem>>, vector<8x48xf32>
    %c0_1 = arith.constant 0 : index
    %c0_2 = arith.constant 0 : index
    %1 = vector.load %arg2[%c0_1, %c0_2] : memref<776x128xf32, #tpu.memory_space<vmem>>, vector<48x128xf32>
    %c768 = arith.constant 768 : index
    %c0_3 = arith.constant 0 : index
    %2 = vector.load %arg2[%c768, %c0_3] : memref<776x128xf32, #tpu.memory_space<vmem>>, vector<1x128xf32>
    %cst = arith.constant dense<0.000000e+00> : vector<8x128xf32>
    %3 = tpu.matmul %0, %1, %cst {dimension_numbers = #tpu.dot_dimension_numbers<[1], [0], [0], [1], [0, 0, 1, 1], [], []>} : vector<8x48xf32>, vector<48x128xf32>, vector<8x128xf32> -> vector<8x128xf32>
    %4 = vector.broadcast %2 : vector<1x128xf32> to vector<8x128xf32>
    %5 = arith.addf %3, %4 : vector<8x128xf32>
    %cst_4 = arith.constant 0.000000e+00 : f32
    %6 = vector.broadcast %cst_4 : f32 to vector<8x128xf32>
    %7 = arith.maximumf %5, %6 : vector<8x128xf32>
    %c128 = arith.constant 128 : index
    %c0_5 = arith.constant 0 : index
    %8 = vector.load %arg2[%c128, %c0_5] : memref<776x128xf32, #tpu.memory_space<vmem>>, vector<128x128xf32>
    %c769 = arith.constant 769 : index
    %c0_6 = arith.constant 0 : index
    %9 = vector.load %arg2[%c769, %c0_6] : memref<776x128xf32, #tpu.memory_space<vmem>>, vector<1x128xf32>
    %cst_7 = arith.constant dense<0.000000e+00> : vector<8x128xf32>
    %10 = tpu.matmul %7, %8, %cst_7 {dimension_numbers = #tpu.dot_dimension_numbers<[1], [0], [0], [1], [0, 0, 1, 1], [], []>} : vector<8x128xf32>, vector<128x128xf32>, vector<8x128xf32> -> vector<8x128xf32>
    %11 = vector.broadcast %9 : vector<1x128xf32> to vector<8x128xf32>
    %12 = arith.addf %10, %11 : vector<8x128xf32>
    %cst_8 = arith.constant 0.000000e+00 : f32
    %13 = vector.broadcast %cst_8 : f32 to vector<8x128xf32>
    %14 = arith.maximumf %12, %13 : vector<8x128xf32>
    %c256 = arith.constant 256 : index
    %c0_9 = arith.constant 0 : index
    %15 = vector.load %arg2[%c256, %c0_9] : memref<776x128xf32, #tpu.memory_space<vmem>>, vector<128x128xf32>
    %c770 = arith.constant 770 : index
    %c0_10 = arith.constant 0 : index
    %16 = vector.load %arg2[%c770, %c0_10] : memref<776x128xf32, #tpu.memory_space<vmem>>, vector<1x128xf32>
    %cst_11 = arith.constant dense<0.000000e+00> : vector<8x128xf32>
    %17 = tpu.matmul %14, %15, %cst_11 {dimension_numbers = #tpu.dot_dimension_numbers<[1], [0], [0], [1], [0, 0, 1, 1], [], []>} : vector<8x128xf32>, vector<128x128xf32>, vector<8x128xf32> -> vector<8x128xf32>
    %18 = vector.broadcast %16 : vector<1x128xf32> to vector<8x128xf32>
    %19 = arith.addf %17, %18 : vector<8x128xf32>
    %20 = math.tanh %19 : vector<8x128xf32>
    %c384 = arith.constant 384 : index
    %c0_12 = arith.constant 0 : index
    %21 = vector.load %arg2[%c384, %c0_12] : memref<776x128xf32, #tpu.memory_space<vmem>>, vector<128x128xf32>
    %c771 = arith.constant 771 : index
    %c0_13 = arith.constant 0 : index
    %22 = vector.load %arg2[%c771, %c0_13] : memref<776x128xf32, #tpu.memory_space<vmem>>, vector<1x128xf32>
    %cst_14 = arith.constant dense<0.000000e+00> : vector<8x128xf32>
    %23 = tpu.matmul %20, %21, %cst_14 {dimension_numbers = #tpu.dot_dimension_numbers<[1], [0], [0], [1], [0, 0, 1, 1], [], []>} : vector<8x128xf32>, vector<128x128xf32>, vector<8x128xf32> -> vector<8x128xf32>
    %24 = vector.broadcast %22 : vector<1x128xf32> to vector<8x128xf32>
    %25 = arith.addf %23, %24 : vector<8x128xf32>
    %cst_15 = arith.constant 0.000000e+00 : f32
    %26 = vector.broadcast %cst_15 : f32 to vector<8x128xf32>
    %27 = arith.maximumf %25, %26 : vector<8x128xf32>
    %c512 = arith.constant 512 : index
    %c0_16 = arith.constant 0 : index
    %28 = vector.load %arg2[%c512, %c0_16] : memref<776x128xf32, #tpu.memory_space<vmem>>, vector<128x128xf32>
    %c772 = arith.constant 772 : index
    %c0_17 = arith.constant 0 : index
    %29 = vector.load %arg2[%c772, %c0_17] : memref<776x128xf32, #tpu.memory_space<vmem>>, vector<1x128xf32>
    %cst_18 = arith.constant dense<0.000000e+00> : vector<8x128xf32>
    %30 = tpu.matmul %27, %28, %cst_18 {dimension_numbers = #tpu.dot_dimension_numbers<[1], [0], [0], [1], [0, 0, 1, 1], [], []>} : vector<8x128xf32>, vector<128x128xf32>, vector<8x128xf32> -> vector<8x128xf32>
    %31 = vector.broadcast %29 : vector<1x128xf32> to vector<8x128xf32>
    %32 = arith.addf %30, %31 : vector<8x128xf32>
    %cst_19 = arith.constant 0.000000e+00 : f32
    %33 = vector.broadcast %cst_19 : f32 to vector<8x128xf32>
    %34 = arith.maximumf %32, %33 : vector<8x128xf32>
    %c640 = arith.constant 640 : index
    %c0_20 = arith.constant 0 : index
    %35 = vector.load %arg2[%c640, %c0_20] : memref<776x128xf32, #tpu.memory_space<vmem>>, vector<128x128xf32>
    %c773 = arith.constant 773 : index
    %c0_21 = arith.constant 0 : index
    %36 = vector.load %arg2[%c773, %c0_21] : memref<776x128xf32, #tpu.memory_space<vmem>>, vector<1x128xf32>
    %cst_22 = arith.constant dense<0.000000e+00> : vector<8x128xf32>
    %37 = tpu.matmul %34, %35, %cst_22 {dimension_numbers = #tpu.dot_dimension_numbers<[1], [0], [0], [1], [0, 0, 1, 1], [], []>} : vector<8x128xf32>, vector<128x128xf32>, vector<8x128xf32> -> vector<8x128xf32>
    %38 = vector.broadcast %36 : vector<1x128xf32> to vector<8x128xf32>
    %39 = arith.addf %37, %38 : vector<8x128xf32>
    %40 = arith.addf %39, %20 : vector<8x128xf32>
    %c0_23 = arith.constant 0 : index
    %c0_24 = arith.constant 0 : index
    %41 = vector.load %arg3[%c0_23, %c0_24] : memref<8x128xf32, #tpu.memory_space<vmem>>, vector<8x128xf32>
    tpu.vector_store %arg3[%c0_23, %c0_24], %40 {strides = array<i32>} : memref<8x128xf32, #tpu.memory_space<vmem>>, vector<8x128xf32>,
    return
  }
  func.func @transform_0(%arg0: i32) -> (i32, i32) {
    %c0_i32 = arith.constant 0 : i32
    %c0_i32_0 = arith.constant 0 : i32
    return %arg0, %c0_i32 : i32, i32
  }
  func.func @transform_1(%arg0: i32) -> (i32, i32) {
    %c0_i32 = arith.constant 0 : i32
    %c0_i32_0 = arith.constant 0 : i32
    %c0_i32_1 = arith.constant 0 : i32
    return %c0_i32, %c0_i32_0 : i32, i32
  }
  func.func @transform_2(%arg0: i32) -> (i32, i32) {
    %c0_i32 = arith.constant 0 : i32
    %c0_i32_0 = arith.constant 0 : i32
    return %arg0, %c0_i32 : i32, i32
  }
}

</mosaic_0001>

<llo_original>
// kernel: multi_articulator_autoencoder.1
$region0: #{multi_articulator_autoencoder.1}
  #allocation0 [shape = 'u32[]', space=smem, size = 0x4, offset = 0x4, fixed_abs, tag = 'smem constant byte address 0x4 - core index']
  #allocation1 [shape = 'u32[144,128]{1,0:T(1,128)}', space=vmem, size = 0x12000, scoped, tag = 'internal scratch']
  %s0 = inlined_call_operand.vmem [shape: f32[8,48], index: 0, kind: input, shape index: {}]
  %s1 = inlined_call_operand.hbm [shape: f32[776,128], index: 1, kind: input, shape index: {}]
  %s2 = inlined_call_operand.vmem [shape: f32[8,128], index: 2, kind: output, shape index: {}]
  %s3 = sld [smem:[#allocation0]]
  $region22: #{multi_articulator_autoencoder.1} parent=0
    _
  %s5 = ssub.s32 1, %s3
  %s6 = scalar_select 0, %s5, %s3
  $region1: #{multi_articulator_autoencoder.1} parent=0
    #allocation2 [shape = 'u8[397312]{0}', space=vmem, size = 0x61000, scoped, tag = 'input window, operand 1, single buffered']
    #allocation3 [shape = 's32[1]{0}', space=sflag, size = 0x4, scoped, tag = 'scoped memory for multi_articulator_autoencoder.1']
    %7 = vsyncpa [#allocation3], 0
    // Predicated region
    $region2: #{multi_articulator_autoencoder.1} parent=1 // pred_check
      _
    $region3: #{multi_articulator_autoencoder.1} parent=1 // pred_check_branch
      %9 = sbr.rel (0) target = $region5
    $region4: #{multi_articulator_autoencoder.1} parent=1 // pred_region
      _
    $region5: #{multi_articulator_autoencoder.1} parent=1 // pred_fallthru
      _
    // Predicated region
    $region6: #{multi_articulator_autoencoder.1} parent=1 // pred_check
      _
    $region7: #{multi_articulator_autoencoder.1} parent=1 // pred_check_branch
      %11 = sbr.rel (0) target = $region9
    $region8: #{multi_articulator_autoencoder.1} parent=1 // pred_region
      %s13 = ssub.s32 12416, 12416
      %14 = vsyncadd [#allocation3], %s13
      %s15 = sshll.u32 [#allocation2], 4
      %s16 = int_to_ptr.vmem [resolvable:$true] %s15
      %21 = dma.hbm_to_vmem [thread:$0]  %s1, 12416, %s16, [#allocation3], 128, 128, 8
    $region9: #{multi_articulator_autoencoder.1} parent=1 // pred_fallthru
      _
    // Predicated region
    $region10: #{multi_articulator_autoencoder.1} parent=1 // pred_check
      _
    $region11: #{multi_articulator_autoencoder.1} parent=1 // pred_check_branch
      %23 = sbr.rel (0) target = $region13
    $region12: #{multi_articulator_autoencoder.1} parent=1 // pred_region
      %24 = dma.done [#allocation3], 12416
    $region13: #{multi_articulator_autoencoder.1} parent=1 // pred_fallthru
      _
    %v25 = vld [vmem:[%s0] sm:$0xff]
    %v26 = vld [vmem:[#allocation2] sm:$0xff]
    %v27 = vld [vmem:[#allocation2 + $0x8] sm:$0xff]
    %v28 = vld [vmem:[#allocation2 + $0x10] sm:$0xff]
    %v29 = vld [vmem:[#allocation2 + $0x18] sm:$0xff]
    %v30 = vld [vmem:[#allocation2 + $0x20] sm:$0xff]
    %v31 = vld [vmem:[#allocation2 + $0x28] sm:$0xff]
    %v32 = vld [vmem:[#allocation2 + $0x300] sm:$0x1]
    %v33 = vlaneseq
    %v34 = vshrl.u32 %v33, 7
    %v35 = vsub.s32 0, %v34
    %v36 = vrot.slane %v32, %v35
    %vm37 = vcmask 392192
    %v39 = vsel %vm37, %v25, 0
    %41 = vmatprep.subr.mxu0 0.0
    %42 = vmatpush1.msra.mxu0 %v26
    %43 = vmatprep.subr.mxu0 0.0
    %44 = vmatpush1.msra.mxu0 %v27
    %45 = vmatprep.subr.mxu0 0.0
    %46 = vmatpush1.msra.mxu0 %v28
    %47 = vmatprep.subr.mxu0 0.0
    %48 = vmatpush1.msra.mxu0 %v29
    %49 = vmatprep.subr.mxu0 0.0
    %50 = vmatpush1.msra.mxu0 %v30
    %51 = vmatprep.subr.mxu0 0.0
    %52 = vmatpush1.msra.mxu0 %v31
    %53 = vmatprep.subr.mxu0 0.0
    %54 = vmatpush1.msra.mxu0 0.0
    %55 = vmatprep.subr.mxu0 0.0
    %56 = vmatpush1.msra.mxu0 0.0
    %57 = vmatprep.subr.mxu0 0.0
    %58 = vmatpush1.msra.mxu0 0.0
    %59 = vmatprep.subr.mxu0 0.0
    %60 = vmatpush1.msra.mxu0 0.0
    %61 = vmatprep.subr.mxu0 0.0
    %62 = vmatpush1.msra.mxu0 0.0
    %63 = vmatprep.subr.mxu0 0.0
    %64 = vmatpush1.msra.mxu0 0.0
    %65 = vmatprep.subr.mxu0 0.0
    %66 = vmatpush1.msra.mxu0 0.0
    %67 = vmatprep.subr.mxu0 0.0
    %68 = vmatpush1.msra.mxu0 0.0
    %69 = vmatprep.subr.mxu0 0.0
    %70 = vmatpush1.msra.mxu0 0.0
    %71 = vmatprep.subr.mxu0 0.0
    %72 = vmatpush1.msra.mxu0 0.0
    %73 = vmatprep.subr.mxu0 0.0
    %74 = vmatpush1.msra.mxu0 0.0
    %75 = vmatprep.subr.mxu0 0.0
    %76 = vmatpush1.msra.mxu0 0.0
    %77 = vmatprep.subr.mxu0 0.0
    %78 = vmatpush1.msra.mxu0 0.0
    %79 = vmatprep.subr.mxu0 0.0
    %80 = vmatpush1.msra.mxu0 0.0
    %81 = vmatprep.subr.mxu0 0.0
    %82 = vmatpush1.msra.mxu0 0.0
    %83 = vmatprep.subr.mxu0 0.0
    %84 = vmatpush1.msra.mxu0 0.0
    %85 = vmatprep.subr.mxu0 0.0
    %86 = vmatpush1.msra.mxu0 0.0
    %87 = vmatprep.subr.mxu0 0.0
    %88 = vmatpush1.msra.mxu0 0.0
    %89 = vmatprep.subr.mxu0 0.0
    %90 = vmatpush1.msra.mxu0 0.0
    %91 = vmatprep.subr.mxu0 0.0
    %92 = vmatpush1.msra.mxu0 0.0
    %93 = vmatprep.subr.mxu0 0.0
    %94 = vmatpush1.msra.mxu0 0.0
    %95 = vmatprep.subr.mxu0 0.0
    %96 = vmatpush1.msra.mxu0 0.0
    %97 = vmatprep.subr.mxu0 0.0
    %98 = vmatpush1.msra.mxu0 0.0
    %99 = vmatprep.subr.mxu0 0.0
    %100 = vmatpush1.msra.mxu0 0.0
    %101 = vmatprep.subr.mxu0 0.0
    %102 = vmatpush1.msra.mxu0 0.0
    %103 = vmatprep.subr.mxu0 0.0
    %104 = vmatpush1.msra.mxu0 0.0
    %105 = vmatprep.mubr.f32.mxu0 0.0
    %106 = vmatmul.mubr.f32.gmra.mrb[0].mxu0 %v39
    %v107 = vpop.f32.mrb[0].mxu0
    %v108 = vadd.f32 %v36, %v107
    %v109 = vpop.f32.mrb[0].mxu0
    %110 = vdwg.mxu0
    %v111 = vmax.f32 %v108, 0.0
    %v112 = vld [vmem:[#allocation2 + $0x80] sm:$0xff]
    %v113 = vld [vmem:[#allocation2 + $0x88] sm:$0xff]
    %v114 = vld [vmem:[#allocation2 + $0x90] sm:$0xff]
    %v115 = vld [vmem:[#allocation2 + $0x98] sm:$0xff]
    %v116 = vld [vmem:[#allocation2 + $0xa0] sm:$0xff]
    %v117 = vld [vmem:[#allocation2 + $0xa8] sm:$0xff]
    %v118 = vld [vmem:[#allocation2 + $0xb0] sm:$0xff]
    %v119 = vld [vmem:[#allocation2 + $0xb8] sm:$0xff]
    %v120 = vld [vmem:[#allocation2 + $0xc0] sm:$0xff]
    %v121 = vld [vmem:[#allocation2 + $0xc8] sm:$0xff]
    %v122 = vld [vmem:[#allocation2 + $0xd0] sm:$0xff]
    %v123 = vld [vmem:[#allocation2 + $0xd8] sm:$0xff]
    %v124 = vld [vmem:[#allocation2 + $0xe0] sm:$0xff]
    %v125 = vld [vmem:[#allocation2 + $0xe8] sm:$0xff]
    %v126 = vld [vmem:[#allocation2 + $0xf0] sm:$0xff]
    %v127 = vld [vmem:[#allocation2 + $0xf8] sm:$0xff]
    %v128 = vld [vmem:[#allocation2 + $0x301] sm:$0x1]
    %v129 = vlaneseq
    %v130 = vshrl.u32 %v129, 7
    %v131 = vsub.s32 0, %v130
    %v132 = vrot.slane %v128, %v131
    %133 = vmatprep.subr.mxu0 0.0
    %134 = vmatpush1.msra.mxu0 %v112
    %135 = vmatprep.subr.mxu0 0.0
    %136 = vmatpush1.msra.mxu0 %v113
    %137 = vmatprep.subr.mxu0 0.0
    %138 = vmatpush1.msra.mxu0 %v114
    %139 = vmatprep.subr.mxu0 0.0
    %140 = vmatpush1.msra.mxu0 %v115
    %141 = vmatprep.subr.mxu0 0.0
    %142 = vmatpush1.msra.mxu0 %v116
    %143 = vmatprep.subr.mxu0 0.0
    %144 = vmatpush1.msra.mxu0 %v117
    %145 = vmatprep.subr.mxu0 0.0
    %146 = vmatpush1.msra.mxu0 %v118
    %147 = vmatprep.subr.mxu0 0.0
    %148 = vmatpush1.msra.mxu0 %v119
    %149 = vmatprep.subr.mxu0 0.0
    %150 = vmatpush1.msra.mxu0 %v120
    %151 = vmatprep.subr.mxu0 0.0
    %152 = vmatpush1.msra.mxu0 %v121
    %153 = vmatprep.subr.mxu0 0.0
    %154 = vmatpush1.msra.mxu0 %v122
    %155 = vmatprep.subr.mxu0 0.0
    %156 = vmatpush1.msra.mxu0 %v123
    %157 = vmatprep.subr.mxu0 0.0
    %158 = vmatpush1.msra.mxu0 %v124
    %159 = vmatprep.subr.mxu0 0.0
    %160 = vmatpush1.msra.mxu0 %v125
    %161 = vmatprep.subr.mxu0 0.0
    %162 = vmatpush1.msra.mxu0 %v126
    %163 = vmatprep.subr.mxu0 0.0
    %164 = vmatpush1.msra.mxu0 %v127
    %165 = vmatprep.subr.mxu0 0.0
    %166 = vmatpush1.msra.mxu0 0.0
    %167 = vmatprep.subr.mxu0 0.0
    %168 = vmatpush1.msra.mxu0 0.0
    %169 = vmatprep.subr.mxu0 0.0
    %170 = vmatpush1.msra.mxu0 0.0
    %171 = vmatprep.subr.mxu0 0.0
    %172 = vmatpush1.msra.mxu0 0.0
    %173 = vmatprep.subr.mxu0 0.0
    %174 = vmatpush1.msra.mxu0 0.0
    %175 = vmatprep.subr.mxu0 0.0
    %176 = vmatpush1.msra.mxu0 0.0
    %177 = vmatprep.subr.mxu0 0.0
    %178 = vmatpush1.msra.mxu0 0.0
    %179 = vmatprep.subr.mxu0 0.0
    %180 = vmatpush1.msra.mxu0 0.0
    %181 = vmatprep.subr.mxu0 0.0
    %182 = vmatpush1.msra.mxu0 0.0
    %183 = vmatprep.subr.mxu0 0.0
    %184 = vmatpush1.msra.mxu0 0.0
    %185 = vmatprep.subr.mxu0 0.0
    %186 = vmatpush1.msra.mxu0 0.0
    %187 = vmatprep.subr.mxu0 0.0
    %188 = vmatpush1.msra.mxu0 0.0
    %189 = vmatprep.subr.mxu0 0.0
    %190 = vmatpush1.msra.mxu0 0.0
    %191 = vmatprep.subr.mxu0 0.0
    %192 = vmatpush1.msra.mxu0 0.0
    %193 = vmatprep.subr.mxu0 0.0
    %194 = vmatpush1.msra.mxu0 0.0
    %195 = vmatprep.subr.mxu0 0.0
    %196 = vmatpush1.msra.mxu0 0.0
    %197 = vmatprep.mubr.f32.mxu0 0.0
    %198 = vmatmul.mubr.f32.gmra.mrb[0].mxu0 %v111
    %v199 = vpop.f32.mrb[0].mxu0
    %v200 = vadd.f32 %v132, %v199
    %v201 = vpop.f32.mrb[0].mxu0
    %202 = vdwg.mxu0
    %v203 = vmax.f32 %v200, 0.0
    %v204 = vld [vmem:[#allocation2 + $0x100] sm:$0xff]
    %v205 = vld [vmem:[#allocation2 + $0x108] sm:$0xff]
    %v206 = vld [vmem:[#allocation2 + $0x110] sm:$0xff]
    %v207 = vld [vmem:[#allocation2 + $0x118] sm:$0xff]
    %v208 = vld [vmem:[#allocation2 + $0x120] sm:$0xff]
    %v209 = vld [vmem:[#allocation2 + $0x128] sm:$0xff]
    %v210 = vld [vmem:[#allocation2 + $0x130] sm:$0xff]
    %v211 = vld [vmem:[#allocation2 + $0x138] sm:$0xff]
    %v212 = vld [vmem:[#allocation2 + $0x140] sm:$0xff]
    %v213 = vld [vmem:[#allocation2 + $0x148] sm:$0xff]
    %v214 = vld [vmem:[#allocation2 + $0x150] sm:$0xff]
    %v215 = vld [vmem:[#allocation2 + $0x158] sm:$0xff]
    %v216 = vld [vmem:[#allocation2 + $0x160] sm:$0xff]
    %v217 = vld [vmem:[#allocation2 + $0x168] sm:$0xff]
    %v218 = vld [vmem:[#allocation2 + $0x170] sm:$0xff]
    %v219 = vld [vmem:[#allocation2 + $0x178] sm:$0xff]
    %v220 = vld [vmem:[#allocation2 + $0x302] sm:$0x1]
    %v221 = vlaneseq
    %v222 = vshrl.u32 %v221, 7
    %v223 = vsub.s32 0, %v222
    %v224 = vrot.slane %v220, %v223
    %225 = vmatprep.subr.mxu0 0.0
    %226 = vmatpush1.msra.mxu0 %v204
    %227 = vmatprep.subr.mxu0 0.0
    %228 = vmatpush1.msra.mxu0 %v205
    %229 = vmatprep.subr.mxu0 0.0
    %230 = vmatpush1.msra.mxu0 %v206
    %231 = vmatprep.subr.mxu0 0.0
    %232 = vmatpush1.msra.mxu0 %v207
    %233 = vmatprep.subr.mxu0 0.0
    %234 = vmatpush1.msra.mxu0 %v208
    %235 = vmatprep.subr.mxu0 0.0
    %236 = vmatpush1.msra.mxu0 %v209
    %237 = vmatprep.subr.mxu0 0.0
    %238 = vmatpush1.msra.mxu0 %v210
    %239 = vmatprep.subr.mxu0 0.0
    %240 = vmatpush1.msra.mxu0 %v211
    %241 = vmatprep.subr.mxu0 0.0
    %242 = vmatpush1.msra.mxu0 %v212
    %243 = vmatprep.subr.mxu0 0.0
    %244 = vmatpush1.msra.mxu0 %v213
    %245 = vmatprep.subr.mxu0 0.0
    %246 = vmatpush1.msra.mxu0 %v214
    %247 = vmatprep.subr.mxu0 0.0
    %248 = vmatpush1.msra.mxu0 %v215
    %249 = vmatprep.subr.mxu0 0.0
    %250 = vmatpush1.msra.mxu0 %v216
    %251 = vmatprep.subr.mxu0 0.0
    %252 = vmatpush1.msra.mxu0 %v217
    %253 = vmatprep.subr.mxu0 0.0
    %254 = vmatpush1.msra.mxu0 %v218
    %255 = vmatprep.subr.mxu0 0.0
    %256 = vmatpush1.msra.mxu0 %v219
    %257 = vmatprep.subr.mxu0 0.0
    %258 = vmatpush1.msra.mxu0 0.0
    %259 = vmatprep.subr.mxu0 0.0
    %260 = vmatpush1.msra.mxu0 0.0
    %261 = vmatprep.subr.mxu0 0.0
    %262 = vmatpush1.msra.mxu0 0.0
    %263 = vmatprep.subr.mxu0 0.0
    %264 = vmatpush1.msra.mxu0 0.0
    %265 = vmatprep.subr.mxu0 0.0
    %266 = vmatpush1.msra.mxu0 0.0
    %267 = vmatprep.subr.mxu0 0.0
    %268 = vmatpush1.msra.mxu0 0.0
    %269 = vmatprep.subr.mxu0 0.0
    %270 = vmatpush1.msra.mxu0 0.0
    %271 = vmatprep.subr.mxu0 0.0
    %272 = vmatpush1.msra.mxu0 0.0
    %273 = vmatprep.subr.mxu0 0.0
    %274 = vmatpush1.msra.mxu0 0.0
    %275 = vmatprep.subr.mxu0 0.0
    %276 = vmatpush1.msra.mxu0 0.0
    %277 = vmatprep.subr.mxu0 0.0
    %278 = vmatpush1.msra.mxu0 0.0
    %279 = vmatprep.subr.mxu0 0.0
    %280 = vmatpush1.msra.mxu0 0.0
    %281 = vmatprep.subr.mxu0 0.0
    %282 = vmatpush1.msra.mxu0 0.0
    %283 = vmatprep.subr.mxu0 0.0
    %284 = vmatpush1.msra.mxu0 0.0
    %285 = vmatprep.subr.mxu0 0.0
    %286 = vmatpush1.msra.mxu0 0.0
    %287 = vmatprep.subr.mxu0 0.0
    %288 = vmatpush1.msra.mxu0 0.0
    %289 = vmatprep.mubr.f32.mxu0 0.0
    %290 = vmatmul.mubr.f32.gmra.mrb[0].mxu0 %v203
    %v291 = vpop.f32.mrb[0].mxu0
    %v292 = vadd.f32 %v224, %v291
    %v293 = vpop.f32.mrb[0].mxu0
    %294 = vdwg.mxu0
    %v295 = vtanh.pop %v292
    %v296 = vld [vmem:[#allocation2 + $0x180] sm:$0xff]
    %v297 = vld [vmem:[#allocation2 + $0x188] sm:$0xff]
    %v298 = vld [vmem:[#allocation2 + $0x190] sm:$0xff]
    %v299 = vld [vmem:[#allocation2 + $0x198] sm:$0xff]
    %v300 = vld [vmem:[#allocation2 + $0x1a0] sm:$0xff]
    %v301 = vld [vmem:[#allocation2 + $0x1a8] sm:$0xff]
    %v302 = vld [vmem:[#allocation2 + $0x1b0] sm:$0xff]
    %v303 = vld [vmem:[#allocation2 + $0x1b8] sm:$0xff]
    %v304 = vld [vmem:[#allocation2 + $0x1c0] sm:$0xff]
    %v305 = vld [vmem:[#allocation2 + $0x1c8] sm:$0xff]
    %v306 = vld [vmem:[#allocation2 + $0x1d0] sm:$0xff]
    %v307 = vld [vmem:[#allocation2 + $0x1d8] sm:$0xff]
    %v308 = vld [vmem:[#allocation2 + $0x1e0] sm:$0xff]
    %v309 = vld [vmem:[#allocation2 + $0x1e8] sm:$0xff]
    %v310 = vld [vmem:[#allocation2 + $0x1f0] sm:$0xff]
    %v311 = vld [vmem:[#allocation2 + $0x1f8] sm:$0xff]
    %v312 = vld [vmem:[#allocation2 + $0x303] sm:$0x1]
    %v313 = vlaneseq
    %v314 = vshrl.u32 %v313, 7
    %v315 = vsub.s32 0, %v314
    %v316 = vrot.slane %v312, %v315
    %317 = vmatprep.subr.mxu0 0.0
    %318 = vmatpush1.msra.mxu0 %v296
    %319 = vmatprep.subr.mxu0 0.0
    %320 = vmatpush1.msra.mxu0 %v297
    %321 = vmatprep.subr.mxu0 0.0
    %322 = vmatpush1.msra.mxu0 %v298
    %323 = vmatprep.subr.mxu0 0.0
    %324 = vmatpush1.msra.mxu0 %v299
    %325 = vmatprep.subr.mxu0 0.0
    %326 = vmatpush1.msra.mxu0 %v300
    %327 = vmatprep.subr.mxu0 0.0
    %328 = vmatpush1.msra.mxu0 %v301
    %329 = vmatprep.subr.mxu0 0.0
    %330 = vmatpush1.msra.mxu0 %v302
    %331 = vmatprep.subr.mxu0 0.0
    %332 = vmatpush1.msra.mxu0 %v303
    %333 = vmatprep.subr.mxu0 0.0
    %334 = vmatpush1.msra.mxu0 %v304
    %335 = vmatprep.subr.mxu0 0.0
    %336 = vmatpush1.msra.mxu0 %v305
    %337 = vmatprep.subr.mxu0 0.0
    %338 = vmatpush1.msra.mxu0 %v306
    %339 = vmatprep.subr.mxu0 0.0
    %340 = vmatpush1.msra.mxu0 %v307
    %341 = vmatprep.subr.mxu0 0.0
    %342 = vmatpush1.msra.mxu0 %v308
    %343 = vmatprep.subr.mxu0 0.0
    %344 = vmatpush1.msra.mxu0 %v309
    %345 = vmatprep.subr.mxu0 0.0
    %346 = vmatpush1.msra.mxu0 %v310
    %347 = vmatprep.subr.mxu0 0.0
    %348 = vmatpush1.msra.mxu0 %v311
    %349 = vmatprep.subr.mxu0 0.0
    %350 = vmatpush1.msra.mxu0 0.0
    %351 = vmatprep.subr.mxu0 0.0
    %352 = vmatpush1.msra.mxu0 0.0
    %353 = vmatprep.subr.mxu0 0.0
    %354 = vmatpush1.msra.mxu0 0.0
    %355 = vmatprep.subr.mxu0 0.0
    %356 = vmatpush1.msra.mxu0 0.0
    %357 = vmatprep.subr.mxu0 0.0
    %358 = vmatpush1.msra.mxu0 0.0
    %359 = vmatprep.subr.mxu0 0.0
    %360 = vmatpush1.msra.mxu0 0.0
    %361 = vmatprep.subr.mxu0 0.0
    %362 = vmatpush1.msra.mxu0 0.0
    %363 = vmatprep.subr.mxu0 0.0
    %364 = vmatpush1.msra.mxu0 0.0
    %365 = vmatprep.subr.mxu0 0.0
    %366 = vmatpush1.msra.mxu0 0.0
    %367 = vmatprep.subr.mxu0 0.0
    %368 = vmatpush1.msra.mxu0 0.0
    %369 = vmatprep.subr.mxu0 0.0
    %370 = vmatpush1.msra.mxu0 0.0
    %371 = vmatprep.subr.mxu0 0.0
    %372 = vmatpush1.msra.mxu0 0.0
    %373 = vmatprep.subr.mxu0 0.0
    %374 = vmatpush1.msra.mxu0 0.0
    %375 = vmatprep.subr.mxu0 0.0
    %376 = vmatpush1.msra.mxu0 0.0
    %377 = vmatprep.subr.mxu0 0.0
    %378 = vmatpush1.msra.mxu0 0.0
    %379 = vmatprep.subr.mxu0 0.0
    %380 = vmatpush1.msra.mxu0 0.0
    %381 = vmatprep.mubr.f32.mxu0 0.0
    %382 = vmatmul.mubr.f32.gmra.mrb[0].mxu0 %v295
    %v383 = vpop.f32.mrb[0].mxu0
    %v384 = vadd.f32 %v316, %v383
    %v385 = vpop.f32.mrb[0].mxu0
    %386 = vdwg.mxu0
    %v387 = vmax.f32 %v384, 0.0
    %v388 = vld [vmem:[#allocation2 + $0x200] sm:$0xff]
    %v389 = vld [vmem:[#allocation2 + $0x208] sm:$0xff]
    %v390 = vld [vmem:[#allocation2 + $0x210] sm:$0xff]
    %v391 = vld [vmem:[#allocation2 + $0x218] sm:$0xff]
    %v392 = vld [vmem:[#allocation2 + $0x220] sm:$0xff]
    %v393 = vld [vmem:[#allocation2 + $0x228] sm:$0xff]
    %v394 = vld [vmem:[#allocation2 + $0x230] sm:$0xff]
    %v395 = vld [vmem:[#allocation2 + $0x238] sm:$0xff]
    %v396 = vld [vmem:[#allocation2 + $0x240] sm:$0xff]
    %v397 = vld [vmem:[#allocation2 + $0x248] sm:$0xff]
    %v398 = vld [vmem:[#allocation2 + $0x250] sm:$0xff]
    %v399 = vld [vmem:[#allocation2 + $0x258] sm:$0xff]
    %v400 = vld [vmem:[#allocation2 + $0x260] sm:$0xff]
    %v401 = vld [vmem:[#allocation2 + $0x268] sm:$0xff]
    %v402 = vld [vmem:[#allocation2 + $0x270] sm:$0xff]
    %v403 = vld [vmem:[#allocation2 + $0x278] sm:$0xff]
    %v404 = vld [vmem:[#allocation2 + $0x304] sm:$0x1]
    %v405 = vlaneseq
    %v406 = vshrl.u32 %v405, 7
    %v407 = vsub.s32 0, %v406
    %v408 = vrot.slane %v404, %v407
    %409 = vmatprep.subr.mxu0 0.0
    %410 = vmatpush1.msra.mxu0 %v388
    %411 = vmatprep.subr.mxu0 0.0
    %412 = vmatpush1.msra.mxu0 %v389
    %413 = vmatprep.subr.mxu0 0.0
    %414 = vmatpush1.msra.mxu0 %v390
    %415 = vmatprep.subr.mxu0 0.0
    %416 = vmatpush1.msra.mxu0 %v391
    %417 = vmatprep.subr.mxu0 0.0
    %418 = vmatpush1.msra.mxu0 %v392
    %419 = vmatprep.subr.mxu0 0.0
    %420 = vmatpush1.msra.mxu0 %v393
    %421 = vmatprep.subr.mxu0 0.0
    %422 = vmatpush1.msra.mxu0 %v394
    %423 = vmatprep.subr.mxu0 0.0
    %424 = vmatpush1.msra.mxu0 %v395
    %425 = vmatprep.subr.mxu0 0.0
    %426 = vmatpush1.msra.mxu0 %v396
    %427 = vmatprep.subr.mxu0 0.0
    %428 = vmatpush1.msra.mxu0 %v397
    %429 = vmatprep.subr.mxu0 0.0
    %430 = vmatpush1.msra.mxu0 %v398
    %431 = vmatprep.subr.mxu0 0.0
    %432 = vmatpush1.msra.mxu0 %v399
    %433 = vmatprep.subr.mxu0 0.0
    %434 = vmatpush1.msra.mxu0 %v400
    %435 = vmatprep.subr.mxu0 0.0
    %436 = vmatpush1.msra.mxu0 %v401
    %437 = vmatprep.subr.mxu0 0.0
    %438 = vmatpush1.msra.mxu0 %v402
    %439 = vmatprep.subr.mxu0 0.0
    %440 = vmatpush1.msra.mxu0 %v403
    %441 = vmatprep.subr.mxu0 0.0
    %442 = vmatpush1.msra.mxu0 0.0
    %443 = vmatprep.subr.mxu0 0.0
    %444 = vmatpush1.msra.mxu0 0.0
    %445 = vmatprep.subr.mxu0 0.0
    %446 = vmatpush1.msra.mxu0 0.0
    %447 = vmatprep.subr.mxu0 0.0
    %448 = vmatpush1.msra.mxu0 0.0
    %449 = vmatprep.subr.mxu0 0.0
    %450 = vmatpush1.msra.mxu0 0.0
    %451 = vmatprep.subr.mxu0 0.0
    %452 = vmatpush1.msra.mxu0 0.0
    %453 = vmatprep.subr.mxu0 0.0
    %454 = vmatpush1.msra.mxu0 0.0
    %455 = vmatprep.subr.mxu0 0.0
    %456 = vmatpush1.msra.mxu0 0.0
    %457 = vmatprep.subr.mxu0 0.0
    %458 = vmatpush1.msra.mxu0 0.0
    %459 = vmatprep.subr.mxu0 0.0
    %460 = vmatpush1.msra.mxu0 0.0
    %461 = vmatprep.subr.mxu0 0.0
    %462 = vmatpush1.msra.mxu0 0.0
    %463 = vmatprep.subr.mxu0 0.0
    %464 = vmatpush1.msra.mxu0 0.0
    %465 = vmatprep.subr.mxu0 0.0
    %466 = vmatpush1.msra.mxu0 0.0
    %467 = vmatprep.subr.mxu0 0.0
    %468 = vmatpush1.msra.mxu0 0.0
    %469 = vmatprep.subr.mxu0 0.0
    %470 = vmatpush1.msra.mxu0 0.0
    %471 = vmatprep.subr.mxu0 0.0
    %472 = vmatpush1.msra.mxu0 0.0
    %473 = vmatprep.mubr.f32.mxu0 0.0
    %474 = vmatmul.mubr.f32.gmra.mrb[0].mxu0 %v387
    %v475 = vpop.f32.mrb[0].mxu0
    %v476 = vadd.f32 %v408, %v475
    %v477 = vpop.f32.mrb[0].mxu0
    %478 = vdwg.mxu0
    %v479 = vmax.f32 %v476, 0.0
    %v480 = vld [vmem:[#allocation2 + $0x280] sm:$0xff]
    %v481 = vld [vmem:[#allocation2 + $0x288] sm:$0xff]
    %v482 = vld [vmem:[#allocation2 + $0x290] sm:$0xff]
    %v483 = vld [vmem:[#allocation2 + $0x298] sm:$0xff]
    %v484 = vld [vmem:[#allocation2 + $0x2a0] sm:$0xff]
    %v485 = vld [vmem:[#allocation2 + $0x2a8] sm:$0xff]
    %v486 = vld [vmem:[#allocation2 + $0x2b0] sm:$0xff]
    %v487 = vld [vmem:[#allocation2 + $0x2b8] sm:$0xff]
    %v488 = vld [vmem:[#allocation2 + $0x2c0] sm:$0xff]
    %v489 = vld [vmem:[#allocation2 + $0x2c8] sm:$0xff]
    %v490 = vld [vmem:[#allocation2 + $0x2d0] sm:$0xff]
    %v491 = vld [vmem:[#allocation2 + $0x2d8] sm:$0xff]
    %v492 = vld [vmem:[#allocation2 + $0x2e0] sm:$0xff]
    %v493 = vld [vmem:[#allocation2 + $0x2e8] sm:$0xff]
    %v494 = vld [vmem:[#allocation2 + $0x2f0] sm:$0xff]
    %v495 = vld [vmem:[#allocation2 + $0x2f8] sm:$0xff]
    %v496 = vld [vmem:[#allocation2 + $0x305] sm:$0x1]
    %v497 = vlaneseq
    %v498 = vshrl.u32 %v497, 7
    %v499 = vsub.s32 0, %v498
    %v500 = vrot.slane %v496, %v499
    %501 = vmatprep.subr.mxu0 0.0
    %502 = vmatpush1.msra.mxu0 %v480
    %503 = vmatprep.subr.mxu0 0.0
    %504 = vmatpush1.msra.mxu0 %v481
    %505 = vmatprep.subr.mxu0 0.0
    %506 = vmatpush1.msra.mxu0 %v482
    %507 = vmatprep.subr.mxu0 0.0
    %508 = vmatpush1.msra.mxu0 %v483
    %509 = vmatprep.subr.mxu0 0.0
    %510 = vmatpush1.msra.mxu0 %v484
    %511 = vmatprep.subr.mxu0 0.0
    %512 = vmatpush1.msra.mxu0 %v485
    %513 = vmatprep.subr.mxu0 0.0
    %514 = vmatpush1.msra.mxu0 %v486
    %515 = vmatprep.subr.mxu0 0.0
    %516 = vmatpush1.msra.mxu0 %v487
    %517 = vmatprep.subr.mxu0 0.0
    %518 = vmatpush1.msra.mxu0 %v488
    %519 = vmatprep.subr.mxu0 0.0
    %520 = vmatpush1.msra.mxu0 %v489
    %521 = vmatprep.subr.mxu0 0.0
    %522 = vmatpush1.msra.mxu0 %v490
    %523 = vmatprep.subr.mxu0 0.0
    %524 = vmatpush1.msra.mxu0 %v491
    %525 = vmatprep.subr.mxu0 0.0
    %526 = vmatpush1.msra.mxu0 %v492
    %527 = vmatprep.subr.mxu0 0.0
    %528 = vmatpush1.msra.mxu0 %v493
    %529 = vmatprep.subr.mxu0 0.0
    %530 = vmatpush1.msra.mxu0 %v494
    %531 = vmatprep.subr.mxu0 0.0
    %532 = vmatpush1.msra.mxu0 %v495
    %533 = vmatprep.subr.mxu0 0.0
    %534 = vmatpush1.msra.mxu0 0.0
    %535 = vmatprep.subr.mxu0 0.0
    %536 = vmatpush1.msra.mxu0 0.0
    %537 = vmatprep.subr.mxu0 0.0
    %538 = vmatpush1.msra.mxu0 0.0
    %539 = vmatprep.subr.mxu0 0.0
    %540 = vmatpush1.msra.mxu0 0.0
    %541 = vmatprep.subr.mxu0 0.0
    %542 = vmatpush1.msra.mxu0 0.0
    %543 = vmatprep.subr.mxu0 0.0
    %544 = vmatpush1.msra.mxu0 0.0
    %545 = vmatprep.subr.mxu0 0.0
    %546 = vmatpush1.msra.mxu0 0.0
    %547 = vmatprep.subr.mxu0 0.0
    %548 = vmatpush1.msra.mxu0 0.0
    %549 = vmatprep.subr.mxu0 0.0
    %550 = vmatpush1.msra.mxu0 0.0
    %551 = vmatprep.subr.mxu0 0.0
    %552 = vmatpush1.msra.mxu0 0.0
    %553 = vmatprep.subr.mxu0 0.0
    %554 = vmatpush1.msra.mxu0 0.0
    %555 = vmatprep.subr.mxu0 0.0
    %556 = vmatpush1.msra.mxu0 0.0
    %557 = vmatprep.subr.mxu0 0.0
    %558 = vmatpush1.msra.mxu0 0.0
    %559 = vmatprep.subr.mxu0 0.0
    %560 = vmatpush1.msra.mxu0 0.0
    %561 = vmatprep.subr.mxu0 0.0
    %562 = vmatpush1.msra.mxu0 0.0
    %563 = vmatprep.subr.mxu0 0.0
    %564 = vmatpush1.msra.mxu0 0.0
    %565 = vmatprep.mubr.f32.mxu0 0.0
    %566 = vmatmul.mubr.f32.gmra.mrb[0].mxu0 %v479
    %v567 = vpop.f32.mrb[0].mxu0
    %v568 = vadd.f32 %v500, %v567
    %v569 = vpop.f32.mrb[0].mxu0
    %570 = vdwg.mxu0
    %v571 = vadd.f32 %v568, %v295
    %572 = vst [vmem:[%s2] sm:$0xff] %v571
    // Predicated region
    $region14: #{multi_articulator_autoencoder.1} parent=1 // pred_check
      _
    $region15: #{multi_articulator_autoencoder.1} parent=1 // pred_check_branch
      %574 = sbr.rel (0) target = $region17
    $region16: #{multi_articulator_autoencoder.1} parent=1 // pred_region
      _
    $region17: #{multi_articulator_autoencoder.1} parent=1 // pred_fallthru
      _
    // Predicated region
    $region18: #{multi_articulator_autoencoder.1} parent=1 // pred_check
      _
    $region19: #{multi_articulator_autoencoder.1} parent=1 // pred_check_branch
      %576 = sbr.rel (0) target = $region21
    $region20: #{multi_articulator_autoencoder.1} parent=1 // pred_region
      _
    $region21: #{multi_articulator_autoencoder.1} parent=1 // pred_fallthru
      _
    %577 = vsyncpa [#allocation3], 1

</llo_original>
